<compile_context>
chip_gen: v7x
topology: tpu7x:2x2x1
jax: 0.10.0
libtpu: 0.0.40
codegen_flags: <defaults>
</compile_context>

<pallas_src>
import functools

import jax
import jax.numpy as jnp
from jax.experimental import pallas as pl
from jax.experimental.pallas import tpu as pltpu


def _lowest(dtype):
    dtype = jnp.dtype(dtype)
    if jnp.issubdtype(dtype, jnp.floating):
        return float("-inf")
    return int(jnp.iinfo(dtype).min)


# ----------------------------------------------------------------------------
# Kernel
# ----------------------------------------------------------------------------
def _global_pool_kernel(x_ref, o_ref, *acc_refs, hw, hw_tile, num_s, mode,
                        mask_tail):
    """One (n_block, c_block) tile of the global pool.

    x_ref : (n_tile, c_tile, hw_tile)  input window
    o_ref : (1, n_tile, c_tile)        lane-dense output block (resident over s)
    acc   : (n_tile, c_tile, 1)        accumulator scratch (only when num_s > 1)
    """
    x = x_ref[...]

    if mode == "avg":
        reduce_block = lambda v: jnp.sum(v.astype(jnp.float32), axis=2)
    else:
        # max is exact in the source dtype; skip the f32 up-convert.
        reduce_block = lambda v: jnp.max(v, axis=2)

    inv_hw = 1.0 / hw

    if num_s == 1:
        # Whole spatial axis in a single block: reduce and store directly,
        # no scratch read-modify-write at all.
        r = reduce_block(x)
        if mode == "avg":
            r = r * inv_hw
        o_ref[...] = r.reshape(o_ref.shape).astype(o_ref.dtype)
        return

    acc_ref = acc_refs[0]
    si = pl.program_id(2)
    last = num_s - 1

    @pl.when(si == 0)
    def _init():
        if mode == "avg":
            acc_ref[...] = jnp.zeros_like(acc_ref)
        else:
            acc_ref[...] = jnp.full_like(acc_ref, _lowest(acc_ref.dtype))

    def accumulate(v):
        r = reduce_block(v)[:, :, None]          # (n_tile, c_tile, 1)
        if mode == "avg":
            acc_ref[...] += r
        else:
            acc_ref[...] = jnp.maximum(acc_ref[...], r)

    if mask_tail:
        # Tail mask only on the final spatial step; hot path stays unmasked.
        @pl.when(si < last)
        def _body():
            accumulate(x)

        @pl.when(si == last)
        def _tail():
            lane = jax.lax.broadcasted_iota(jnp.int32, x.shape, 2)
            valid = (last * hw_tile + lane) < hw
            fill = jnp.asarray(0 if mode == "avg" else _lowest(x.dtype), x.dtype)
            accumulate(jnp.where(valid, x, fill))
    else:
        accumulate(x)

    @pl.when(si == last)
    def _finalize():
        acc = acc_ref[...]
        if mode == "avg":
            acc = acc * inv_hw
        o_ref[...] = acc.reshape(o_ref.shape).astype(o_ref.dtype)


# ----------------------------------------------------------------------------
# Tiling heuristic
# ----------------------------------------------------------------------------
def _choose_tiles(N, C, HW, itemsize, target_bytes, max_bytes):
    # c_tile / hw_tile: prefer the whole (C, HW) slab per image; otherwise tile
    # channels first (keeps the reduction single-step), then the spatial axis.
    c_tile, hw_tile = C, HW
    if C * HW * itemsize > max_bytes:
        if C > 128 and C % 128 == 0:
            c_tile = 128
            for m in range(C // 128, 0, -1):   # largest 128-multiple divisor that fits
                ct = 128 * m
                if C % ct == 0 and ct * HW * itemsize <= max_bytes:
                    c_tile = ct
                    break
        if c_tile * hw_tile * itemsize > max_bytes:
            lane_budget = max(128, (max_bytes // (c_tile * itemsize)) // 128 * 128)
            hw_tile = min(lane_budget, HW)
            if HW % 128 == 0:                  # prefer an even split (no ragged tail)
                q = HW // 128
                for m in range(lane_budget // 128, 0, -1):
                    if q % m == 0:
                        hw_tile = 128 * m
                        break

    num_c = C // c_tile
    num_s = (HW + hw_tile - 1) // hw_tile

    # n_tile: pack several images per block only when one image's slab is below
    # the target; keep >= 2 parallel grid blocks so both v7x cores get work.
    n_tile = 1
    block_bytes = c_tile * hw_tile * itemsize
    if num_c == 1 and num_s == 1 and N > 1 and block_bytes < target_bytes:
        want = min(max(1, target_bytes // block_bytes), max(1, N // 2))
        for d in range(int(want), 0, -1):
            if N % d == 0:
                n_tile = d
                break
    return n_tile, c_tile, hw_tile, num_c, num_s


# ----------------------------------------------------------------------------
# Wrapper
# ----------------------------------------------------------------------------
@functools.partial(
    jax.jit,
    static_argnames=("pool_mode", "target_block_bytes", "max_block_bytes"))
def global_pool_flat(x_nchw, pool_mode="avg",
                     target_block_bytes=4 << 20, max_block_bytes=8 << 20):
    if pool_mode not in ("avg", "max"):
        raise ValueError("pool_mode must be 'avg' or 'max'")
    N, C, H, W = x_nchw.shape
    HW = H * W
    dtype = x_nchw.dtype
    itemsize = jnp.dtype(dtype).itemsize

    # Free view: spatial on the lane axis, channels on sublanes, no HBM copy.
    x = x_nchw.reshape(N, C, HW)

    n_tile, c_tile, hw_tile, num_c, num_s = _choose_tiles(
        N, C, HW, itemsize, target_block_bytes, max_block_bytes)
    num_n = N // n_tile
    mask_tail = (HW % hw_tile) != 0

    acc_dtype = jnp.float32 if pool_mode == "avg" else dtype
    scratch = [] if num_s == 1 else [pltpu.VMEM((n_tile, c_tile, 1), acc_dtype)]

    kernel = functools.partial(
        _global_pool_kernel, hw=HW, hw_tile=hw_tile, num_s=num_s,
        mode=pool_mode, mask_tail=mask_tail)

    # VMEM budget: double-buffered input + output blocks + scratch + headroom.
    in_block_bytes = n_tile * c_tile * hw_tile * itemsize
    out_block_bytes = n_tile * c_tile * itemsize
    acc_bytes = 0 if num_s == 1 else n_tile * c_tile * jnp.dtype(acc_dtype).itemsize
    vmem_limit = int(min(
        max(2 * in_block_bytes + 2 * out_block_bytes + acc_bytes + (4 << 20),
            16 << 20),
        56 << 20))

    cost = pl.CostEstimate(
        flops=N * C * HW,
        transcendentals=0,
        bytes_accessed=N * C * HW * itemsize + N * C * itemsize)

    out = pl.pallas_call(
        kernel,
        out_shape=jax.ShapeDtypeStruct((num_n, n_tile, C), dtype),
        grid=(num_n, num_c, num_s),
        in_specs=[pl.BlockSpec((n_tile, c_tile, hw_tile),
                               lambda n, c, s: (n, c, s))],
        out_specs=pl.BlockSpec((1, n_tile, c_tile),
                               lambda n, c, s: (n, 0, c)),
        scratch_shapes=scratch,
        compiler_params=pltpu.CompilerParams(
            dimension_semantics=("parallel", "parallel", "arbitrary"),
            vmem_limit_bytes=vmem_limit),
        cost_estimate=cost,
    )(x)

    # (num_n, n_tile, C) -> (N, C): metadata-only reshape.
    return out.reshape(N, C)


class GlobalPoolFlat:
    """Mirror of the PyTorch module: global pool to 1x1, then flatten."""

    def __init__(self, pool_mode="avg"):
        self.pool_mode = "avg" if pool_mode == "avg" else "max"

    def __call__(self, x_nchw):
        return global_pool_flat(x_nchw, pool_mode=self.pool_mode)


# ----------------------------------------------------------------------------
if __name__ == "__main__":
    key = jax.random.PRNGKey(0)

    # Small case consistent with the module: batch=2, channels=4, 16x16 maps.
    x1 = jax.random.normal(key, (2, 4, 16, 16), jnp.float32)
    pool = GlobalPoolFlat("avg")
    y1 = pool(x1)
    jax.block_until_ready(y1)
    assert y1.shape == (2, 4)
    assert bool(jnp.allclose(y1, jnp.mean(x1, axis=(2, 3)), atol=1e-5, rtol=1e-4))

    # Single-step big-block path (whole C*HW slab per image), avg and max.
    x2 = jax.random.normal(jax.random.fold_in(key, 1), (2, 256, 48, 48), jnp.float32)
    y2a = global_pool_flat(x2, pool_mode="avg")
    y2m = global_pool_flat(x2, pool_mode="max")
    jax.block_until_ready((y2a, y2m))
    assert bool(jnp.allclose(y2a, jnp.mean(x2, axis=(2, 3)), atol=1e-5, rtol=1e-4))
    assert bool(jnp.allclose(y2m, jnp.max(x2, axis=(2, 3))))

    # Force the multi-step spatial path with a ragged (masked) tail by shrinking
    # the block budget: HW=400 -> hw_tile=128, 4 steps, 16-wide masked tail.
    x3 = jax.random.normal(jax.random.fold_in(key, 2), (2, 64, 20, 20), jnp.float32)
    y3a = global_pool_flat(x3, pool_mode="avg",
                           target_block_bytes=16 << 10, max_block_bytes=32 << 10)
    y3m = global_pool_flat(x3, pool_mode="max",
                           target_block_bytes=16 << 10, max_block_bytes=32 << 10)
    jax.block_until_ready((y3a, y3m))
    assert bool(jnp.allclose(y3a, jnp.mean(x3, axis=(2, 3)), atol=1e-5, rtol=1e-4))
    assert bool(jnp.allclose(y3m, jnp.max(x3, axis=(2, 3))))

    assert bool(jnp.isfinite(y1).all())
    assert bool(jnp.isfinite(y2a).all()) and bool(jnp.isfinite(y2m).all())
    print("KERNEL_OK")
</pallas_src>

<mosaic_0001>
module attributes {stable_mosaic.version = 11 : i64} {
  func.func @_global_pool_kernel(%arg0: i32, %arg1: i32, %arg2: i32, %arg3: memref<1x4x256xf32, #tpu.memory_space<vmem>>, %arg4: memref<1x1x4xf32, #tpu.memory_space<vmem>>) attributes {dimension_semantics = [#tpu.dimension_semantics<parallel>, #tpu.dimension_semantics<parallel>, #tpu.dimension_semantics<arbitrary>], iteration_bounds = array<i64: 2, 1, 1>, scalar_prefetch = 0 : i64, scratch_operands = 0 : i64, tpu.core_type = #tpu.core_type<tc>, window_params = [{transform_indices = @transform_0, window_bounds = array<i64: 1, 4, 256>}, {transform_indices = @transform_1, window_bounds = array<i64: 1, 1, 4>}]} {
    %c0 = arith.constant 0 : index
    %c0_0 = arith.constant 0 : index
    %c0_1 = arith.constant 0 : index
    %0 = vector.load %arg3[%c0, %c0_0, %c0_1] : memref<1x4x256xf32, #tpu.memory_space<vmem>>, vector<1x4x256xf32>
    %cst = arith.constant dense<0.000000e+00> : vector<1x4xf32>
    %1 = vector.multi_reduction <add>, %0, %cst [2] : vector<1x4x256xf32> to vector<1x4xf32>
    %cst_2 = arith.constant 3.906250e-03 : f32
    %2 = vector.broadcast %cst_2 : f32 to vector<1x4xf32>
    %3 = arith.mulf %1, %2 : vector<1x4xf32>
    %4 = vector.shape_cast %3 : vector<1x4xf32> to vector<1x1x4xf32>
    %c0_3 = arith.constant 0 : index
    %c0_4 = arith.constant 0 : index
    %c0_5 = arith.constant 0 : index
    %5 = vector.load %arg4[%c0_3, %c0_4, %c0_5] : memref<1x1x4xf32, #tpu.memory_space<vmem>>, vector<1x1x4xf32>
    tpu.vector_store %arg4[%c0_3, %c0_4, %c0_5], %4 {strides = array<i32>} : memref<1x1x4xf32, #tpu.memory_space<vmem>>, vector<1x1x4xf32>,
    return
  }
  func.func @transform_0(%arg0: i32, %arg1: i32, %arg2: i32) -> (i32, i32, i32) {
    %c0_i32 = arith.constant 0 : i32
    return %arg0, %arg1, %arg2 : i32, i32, i32
  }
  func.func @transform_1(%arg0: i32, %arg1: i32, %arg2: i32) -> (i32, i32, i32) {
    %c0_i32 = arith.constant 0 : i32
    %c0_i32_0 = arith.constant 0 : i32
    return %arg0, %c0_i32, %arg1 : i32, i32, i32
  }
}

</mosaic_0001>

<llo_original>
// kernel: global_pool_flat.1
$region0: #{global_pool_flat.1}
  #allocation0 [shape = 'u32[]', space=smem, size = 0x4, offset = 0x4, fixed_abs, tag = 'smem constant byte address 0x4 - core index']
  #allocation1 [shape = 'u32[144,128]{1,0:T(1,128)}', space=vmem, size = 0x12000, scoped, tag = 'internal scratch']
  %s0 = inlined_call_operand.vmem [shape: f32[2,4,256], index: 0, kind: input, shape index: {}]
  %s1 = inlined_call_operand.hbm [shape: f32[2,1,4], index: 1, kind: output, shape index: {}]
  %s2 = sld [smem:[#allocation0]]
  $region37: #{global_pool_flat.1} parent=0
    _
  %s4 = ssub.s32 1, %s2
  %s5 = scalar_select 0, %s4, %s2
  $region1: #{global_pool_flat.1} parent=0
    #allocation2 [shape = 'u8[1024]{0}', space=vmem, size = 0x400, scoped, tag = 'output window, operand 0']
    #allocation3 [shape = 's32[2]{0}', space=sflag, size = 0x8, scoped, tag = 'scoped memory for global_pool_flat.1']
    %6 = vsyncpa [#allocation3], 0
    %s7 = scalar_lea.sflag [#allocation3], 1
    %8 = vsyncpa %s7, 0
    loop: start=0, step=1, limit=4
    $region2: #{global_pool_flat.1} parent=1 // loop_pre_header
      _
    $region3: #{global_pool_flat.1} parent=1 // loop_header
      %s10 = sphi 0, %s14
      %p11 = scmp.ge.s32.totalorder %s10, 4
      %s17 = sphi 0, %s36
      %s18 = sphi 0, %s32
      %s19 = sphi 0, %s28
      %s20 = sphi 0, %s17
      %s21 = sphi 0, %s18
      %s22 = sphi 0, %s19
      %s23 = sphi 0, %s20
      %s24 = sphi 0, %s21
      %s25 = sphi 0, %s22
      %s43 = sphi 0, %s45
      %s46 = sphi 0, %s43
      %s47 = sphi 0, %s46
      %s63 = sphi 0, %s47
      %s71 = sphi 0, %s73
      %s74 = sphi 0, %s71
      %s75 = sphi 0, %s74
      %s91 = sphi 0, %s75
    $region4: #{global_pool_flat.1} parent=1 // loop_header_branch
      %13 = sbr.rel (%p11) target = $region8
    $region5: #{global_pool_flat.1} parent=1 // loop_body
      %s15 = ssub.s32 %s10, 1
      %s16 = ssub.s32 %s10, 2
      %s26 = sadd.s32 1, %s19
      %p27 = scmp.ge.s32.totalorder %s26, 1
      %s28 = scalar_select %p27, 0, %s26
      %s29 = sadd.s32 1, %s18
      %s30 = scalar_select %p27, %s29, %s18
      %p31 = scmp.ge.s32.totalorder %s30, 1
      %s32 = scalar_select %p31, 0, %s30
      %s33 = sadd.s32 1, %s17
      %s34 = scalar_select %p31, %s33, %s17
      %p35 = scmp.ge.s32.totalorder %s34, 2
      %s36 = scalar_select %p35, 0, %s34
      %s37 = ssub.s32 %s17, %s36
      %s38 = ssub.s32 %s18, %s32
      %s39 = sor.u32 %s37, %s38
      %s40 = ssub.s32 %s19, %s28
      %s41 = sor.u32 %s39, %s40
      %p42 = scmp.eq.s32.totalorder %s41, 0
      %s44 = sadd.s32 %s43, 1
      %s45 = scalar_select %p42, %s43, %s44
      %p48 = pneg %p42
      %p49 = scmp.eq.s32.totalorder %s10, 1
      %p50 = por %p48, %p49
      %p51 = scmp.ne.s32.totalorder %s43, %s46
      %p52 = scmp.eq.s32.totalorder %s10, 0
      %p53 = por %p51, %p52
      %p54 = scmp.ne.s32.totalorder %s43, %s46
      %p55 = scmp.eq.s32.totalorder %s15, 1
      %p56 = por %p54, %p55
      %p57 = scmp.ne.s32.totalorder %s46, %s47
      %p58 = scmp.eq.s32.totalorder %s15, 0
      %p59 = por %p57, %p58
      %p60 = scmp.ne.s32.totalorder %s46, %s47
      %p61 = scmp.eq.s32.totalorder %s16, 1
      %p62 = por %p60, %p61
      %p64 = scmp.ne.s32.totalorder %s47, %s63
      %p65 = scmp.eq.s32.totalorder %s16, 0
      %p66 = por %p64, %p65
      %s67 = ssub.s32 %s17, %s36
      %s68 = ssub.s32 %s18, %s32
      %s69 = sor.u32 %s67, %s68
      %p70 = scmp.eq.s32.totalorder %s69, 0
      %s72 = sadd.s32 %s71, 1
      %s73 = scalar_select %p70, %s71, %s72
      %p76 = pneg %p70
      %p77 = scmp.eq.s32.totalorder %s10, 1
      %p78 = por %p76, %p77
      %p79 = scmp.ne.s32.totalorder %s71, %s74
      %p80 = scmp.eq.s32.totalorder %s10, 0
      %p81 = por %p79, %p80
      %p82 = scmp.ne.s32.totalorder %s71, %s74
      %p83 = scmp.eq.s32.totalorder %s15, 1
      %p84 = por %p82, %p83
      %p85 = scmp.ne.s32.totalorder %s74, %s75
      %p86 = scmp.eq.s32.totalorder %s15, 0
      %p87 = por %p85, %p86
      %p88 = scmp.ne.s32.totalorder %s74, %s75
      %p89 = scmp.eq.s32.totalorder %s16, 1
      %p90 = por %p88, %p89
      %p92 = scmp.ne.s32.totalorder %s75, %s91
      %p93 = scmp.eq.s32.totalorder %s16, 0
      %p94 = por %p92, %p93
      %p95 = scmp.le.s32.totalorder 1, %s10
      %p96 = scmp.lt.s32.totalorder %s10, 3
      %p97 = pnand %p95, %p96
      %p98 = pneg %p97
      // Predicated region
      $region9: #{global_pool_flat.1} parent=5 // pred_check
        _
      $region10: #{global_pool_flat.1} parent=5 // pred_check_branch
        %100 = sbr.rel (%p97) target = $region12
      $region11: #{global_pool_flat.1} parent=5 // pred_region
        %s101 = ssub.s32 %s10, 1
      $region12: #{global_pool_flat.1} parent=5 // pred_fallthru
        _
      %p102 = scmp.lt.s32.totalorder %s10, 2
      // Predicated region
      $region13: #{global_pool_flat.1} parent=5 // pred_check
        %p103 = pneg %p102
      $region14: #{global_pool_flat.1} parent=5 // pred_check_branch
        %105 = sbr.rel (%p103) target = $region16
      $region15: #{global_pool_flat.1} parent=5 // pred_region
        // Predicated region
        $region17: #{global_pool_flat.1} parent=15 // pred_check
          %p106 = pneg %p53
        $region18: #{global_pool_flat.1} parent=15 // pred_check_branch
          %108 = sbr.rel (%p106) target = $region20
        $region19: #{global_pool_flat.1} parent=15 // pred_region
          %s109 = smul.u32 2, %s19
          %p110 = scmp.lt.s32.totalorder %s17, 1
          %s111 = scalar_select %p110, %s17, 1
          %p112 = scmp.lt.s32.totalorder %s18, 0
          %s113 = scalar_select %p112, %s18, 0
          %p114 = scmp.lt.s32.totalorder %s109, 1
          %s115 = scalar_select %p114, %s109, 1
          %s116 = smul.addr %s113, 2
          %s117 = sadd.s32 %s115, %s116
          %s118 = smul.addr %s111, 2
          %s119 = sadd.s32 %s117, %s118
          %s120 = smul.addr %s119, 4
          %s121 = scalar_lea.vmem %s0, %s120
          %s122 = smul.u32 2, %s19
        $region20: #{global_pool_flat.1} parent=15 // pred_fallthru
          _
      $region16: #{global_pool_flat.1} parent=5 // pred_fallthru
        _
      %p123 = scmp.le.s32.totalorder 1, %s10
      %p124 = scmp.lt.s32.totalorder %s10, 3
      %p125 = pnand %p123, %p124
      %p126 = pneg %p125
      // Predicated region
      $region21: #{global_pool_flat.1} parent=5 // pred_check
        _
      $region22: #{global_pool_flat.1} parent=5 // pred_check_branch
        %128 = sbr.rel (%p125) target = $region24
      $region23: #{global_pool_flat.1} parent=5 // pred_region
        %s129 = ssub.s32 %s10, 1
        %s130 = smul.u32 2, %s22
        %p131 = scmp.lt.s32.totalorder %s20, 1
        %s132 = scalar_select %p131, %s20, 1
        %p133 = scmp.lt.s32.totalorder %s21, 0
        %s134 = scalar_select %p133, %s21, 0
        %p135 = scmp.lt.s32.totalorder %s130, 1
        %s136 = scalar_select %p135, %s130, 1
        %s137 = smul.addr %s134, 2
        %s138 = sadd.s32 %s136, %s137
        %s139 = smul.addr %s132, 2
        %s140 = sadd.s32 %s138, %s139
        %s141 = smul.addr %s140, 4
        %s142 = scalar_lea.vmem %s0, %s141
        %p143 = pneg %p59
        %p144 = pneg %p56
        %p145 = pneg %p87
        %p146 = pneg %p84
        %s147 = sand.u32 %s74, 1
        %s148 = scalar_lea.sflag [#allocation3], %s147
        %s149 = sand.u32 %s74, 1
        %s150 = scalar_lea.vmem [#allocation2], %s149
        %s151 = smul.u32 2, %s22
        %p152 = scmp.lt.s32.totalorder %s20, 1
        %s153 = scalar_select %p152, %s20, 1
        %p154 = scmp.lt.s32.totalorder %s21, 0
        %s155 = scalar_select %p154, %s21, 0
        %p156 = scmp.lt.s32.totalorder %s151, 1
        %s157 = scalar_select %p156, %s151, 1
        %s158 = smul.addr %s155, 2
        %s159 = sadd.s32 %s157, %s158
        %s160 = smul.addr %s153, 2
        %s161 = sadd.s32 %s159, %s160
        %s162 = smul.addr %s161, 4
        %s163 = scalar_lea.vmem %s0, %s162
        %s164 = smul.u32 2, %s22
        %v165 = vld [vmem:[%s163] sm:$0xff]
        %v167 = vcombine.high %v165, %v165
        %vm169 = vcmask 1043456
        %v170 = vsel %vm169, %v165, 0.0
        %v171 = vsel %vm169, %v167, 0.0
        %v172 = vadd.f32 %v170, %v171
        %173 = vadd.xlane.f32.xlu0 %v172
        %v174 = vpop.xlane.xlu0 %173
        %v175 = vmul.f32 %v174, 0.00390625
        %v177 = vlaneseq
        %v178 = vand.u32 %v177, 127
        %v179 = vlaneseq
        %v180 = vshrl.u32 %v179, 7
        %v181 = vsub.s32 %v178, %v180
        %v182 = vrot.slane %v175, %v181
        %vm184 = vcmask 24576
        %185 = vst.msk [vmem:[%s150] sm:$0x1] %vm184, %v182
        %s186 = sand.u32 %s74, 1
        %s187 = scalar_lea.sflag [#allocation3], %s186
        %s188 = sand.u32 %s74, 1
        %s189 = scalar_lea.vmem [#allocation2], %s188
        // Predicated region
        $region25: #{global_pool_flat.1} parent=23 // pred_check
          %p190 = pneg %p84
        $region26: #{global_pool_flat.1} parent=23 // pred_check_branch
          %192 = sbr.rel (%p190) target = $region28
        $region27: #{global_pool_flat.1} parent=23 // pred_region
          %s194 = ssub.s32 16, 16
          %195 = vsyncadd %s187, %s194
          %s196 = sadd.s32 %s21, %s20
          %s197 = smul.addr %s196, 16
          %s198 = scalar_lea.hbm %s1, %s197
          %s200 = sshll.u32 %s189, 4
          %s201 = int_to_ptr.vmem [resolvable:$true] %s200
          %203 = dma.vmem_to_hbm [thread:$0]  %s201, 16, %s198, %s187
        $region28: #{global_pool_flat.1} parent=23 // pred_fallthru
          _
      $region24: #{global_pool_flat.1} parent=5 // pred_fallthru
        _
      %p204 = scmp.le.s32.totalorder 2, %s10
      // Predicated region
      $region29: #{global_pool_flat.1} parent=5 // pred_check
        %p205 = pneg %p204
      $region30: #{global_pool_flat.1} parent=5 // pred_check_branch
        %207 = sbr.rel (%p205) target = $region32
      $region31: #{global_pool_flat.1} parent=5 // pred_region
        %s208 = ssub.s32 %s10, 2
        // Predicated region
        $region33: #{global_pool_flat.1} parent=31 // pred_check
          %p209 = pneg %p90
        $region34: #{global_pool_flat.1} parent=31 // pred_check_branch
          %211 = sbr.rel (%p209) target = $region36
        $region35: #{global_pool_flat.1} parent=31 // pred_region
          %s212 = sand.u32 %s75, 1
          %s213 = scalar_lea.sflag [#allocation3], %s212
          %s214 = sand.u32 %s75, 1
          %s215 = scalar_lea.vmem [#allocation2], %s214
          %216 = dma.done %s213, 16
        $region36: #{global_pool_flat.1} parent=31 // pred_fallthru
          _
      $region32: #{global_pool_flat.1} parent=5 // pred_fallthru
        _
    $region6: #{global_pool_flat.1} parent=1 // loop_footer
      %s14 = sadd.s32 1, %s10
    $region7: #{global_pool_flat.1} parent=1 // loop_footer_branch
      %9 = sbr.rel target = $region3
    $region8: #{global_pool_flat.1} parent=1 // loop_exit
      _
    %217 = vsyncpa [#allocation3], 1
    %s218 = scalar_lea.sflag [#allocation3], 1
    %219 = vsyncpa %s218, 1

</llo_original>
